<compile_context>
chip_gen: v7x
topology: tpu7x:2x2x1
jax: 0.10.0
libtpu: 0.0.40
codegen_flags: <defaults>
</compile_context>

<pallas_src>
import jax
import jax.numpy as jnp
import numpy as np
from jax.experimental import pallas as pl
from jax.experimental.pallas import tpu as pltpu

_SMOOTH = 1e-5
_LANES = 128                       # lane-dense output slab width
_BLOCK_BYTES_CAP = 4 * 1024 * 1024  # per-input, per-buffer block budget (v7x-safe)
_BN_CAP = 128                      # sublane block cap


def _round_up(x, m):
    return ((x + m - 1) // m) * m


def _sublane_pack(itemsize):
    # Native packed sublane tile: f32 -> 8, bf16 -> 16, int8/fp8 -> 32.
    return {4: 8, 2: 16, 1: 32}.get(itemsize, 8)


def _make_dice_kernel(D, TD, K, need_mask):
    """Builds the per-row dice reduction kernel (closure over static tiling)."""
    last = K - 1
    rem = D - last * TD  # number of valid lanes in the last (ragged) tile

    def accumulate(x_ref, t_ref, inter_acc, osum_acc, tsum_acc, masked):
        # Sigmoid in native dtype (bf16 EUP path on v6e/v7x); accumulate in f32.
        sig = jax.nn.sigmoid(x_ref[...]).astype(jnp.float32)
        t = t_ref[...].astype(jnp.float32)
        if masked:
            # Only ever traced for the last k tile (gated by pl.when below).
            lane = jax.lax.broadcasted_iota(jnp.int32, sig.shape, 1)
            valid = lane < rem
            sig = jnp.where(valid, sig, 0.0)
            t = jnp.where(valid, t, 0.0)
        inter_acc[...] += jnp.sum(sig * t, axis=1, keepdims=True)
        osum_acc[...] += jnp.sum(sig, axis=1, keepdims=True)
        tsum_acc[...] += jnp.sum(t, axis=1, keepdims=True)

    def kernel(x_ref, t_ref, o_ref, inter_acc, osum_acc, tsum_acc):
        k = pl.program_id(1)

        @pl.when(k == 0)
        def _():
            inter_acc[...] = jnp.zeros_like(inter_acc)
            osum_acc[...] = jnp.zeros_like(osum_acc)
            tsum_acc[...] = jnp.zeros_like(tsum_acc)

        if need_mask:
            # Mask cost only on the final tile, not every grid step.
            @pl.when(k < last)
            def _():
                accumulate(x_ref, t_ref, inter_acc, osum_acc, tsum_acc, False)

            @pl.when(k == last)
            def _():
                accumulate(x_ref, t_ref, inter_acc, osum_acc, tsum_acc, True)
        else:
            accumulate(x_ref, t_ref, inter_acc, osum_acc, tsum_acc, False)

        @pl.when(k == last)
        def _():
            dice = (2.0 * inter_acc[...] + _SMOOTH) / (
                osum_acc[...] + tsum_acc[...] + _SMOOTH)
            # Lane-dense (bn, 128) output slab, written exactly once.
            o_ref[...] = jnp.broadcast_to(dice, o_ref.shape)

    return kernel


def _dice_per_sample(x, t):
    """x, t: (N, D) arrays (native dtype). Returns (N,) f32 per-sample dice."""
    N, D = x.shape
    ib_max = max(x.dtype.itemsize, t.dtype.itemsize)
    pack = _sublane_pack(min(x.dtype.itemsize, t.dtype.itemsize))

    # Sublane (batch) block: dtype-packed, small, never the whole batch.
    bn = min(_BN_CAP, _round_up(N, pack))
    NB = pl.cdiv(N, bn)

    # Lane (reduction) tile: as large as the per-block VMEM budget allows.
    td_budget = max(128, (_BLOCK_BYTES_CAP // (bn * ib_max)) // 128 * 128)
    if D <= td_budget:
        TD = D
        need_mask = False
    else:
        # Prefer a 128-multiple divisor of D (>= 1024 lanes): no tail mask at all.
        TD = 0
        for cand in range(td_budget, 1023, -128):
            if D % cand == 0:
                TD = cand
                break
        if TD == 0:
            TD = td_budget
        need_mask = (D % TD) != 0
    K = pl.cdiv(D, TD)

    kernel = _make_dice_kernel(D, TD, K, need_mask)

    # Explicit scoped-VMEM limit sized to the chosen blocks (double-buffered
    # inputs + output slab + accumulators), clamped to stay v7x-safe.
    block_bytes = bn * TD * (x.dtype.itemsize + t.dtype.itemsize)
    vmem_need = 2 * block_bytes + 5 * bn * _LANES * 4
    vmem_limit = max(2 * vmem_need, 24 * 1024 * 1024)
    vmem_limit = min(vmem_limit, 48 * 1024 * 1024)

    cost = pl.CostEstimate(
        flops=4 * N * D,
        transcendentals=N * D,
        bytes_accessed=N * D * (x.dtype.itemsize + t.dtype.itemsize)
        + N * _LANES * 4,
    )

    Np = NB * bn  # pad the (tiny) output allocation so output blocks tile exactly
    out = pl.pallas_call(
        kernel,
        out_shape=jax.ShapeDtypeStruct((Np, _LANES), jnp.float32),
        grid_spec=pltpu.PrefetchScalarGridSpec(
            num_scalar_prefetch=0,
            grid=(NB, K),
            in_specs=[
                pl.BlockSpec((bn, TD), lambda n, k: (n, k)),
                pl.BlockSpec((bn, TD), lambda n, k: (n, k)),
            ],
            out_specs=pl.BlockSpec((bn, _LANES), lambda n, k: (n, 0)),
            scratch_shapes=[
                pltpu.VMEM((bn, 1), jnp.float32),
                pltpu.VMEM((bn, 1), jnp.float32),
                pltpu.VMEM((bn, 1), jnp.float32),
            ],
        ),
        compiler_params=pltpu.CompilerParams(
            dimension_semantics=("parallel", "arbitrary"),
            vmem_limit_bytes=int(vmem_limit),
        ),
        cost_estimate=cost,
    )(x, t)
    # Rows >= N (ragged batch padding) hold unspecified values; drop them.
    return out[:N, 0]


def dice_loss(inp, output, target):
    """JAX/Pallas equivalent of DiceLoss.forward(input, output, target)."""
    del inp  # unused by the PyTorch module
    N = output.shape[0]
    x = output.reshape(N, -1)   # row-major flatten, like .view(num, -1)
    t = target.reshape(N, -1)
    dice_per = _dice_per_sample(x, t)            # (N,)
    return 1.0 - jnp.sum(dice_per) / N


def _reference(inp, output, target):
    """Pure-JAX reference mirroring the PyTorch module."""
    del inp
    N = output.shape[0]
    sig = jax.nn.sigmoid(output.reshape(N, -1).astype(jnp.float32))
    t = target.reshape(N, -1).astype(jnp.float32)
    inter = jnp.sum(sig * t, axis=1)
    dice = (2.0 * inter + _SMOOTH) / (jnp.sum(sig, 1) + jnp.sum(t, 1) + _SMOOTH)
    return 1.0 - jnp.sum(dice) / N


if __name__ == "__main__":
    key = jax.random.PRNGKey(0)
    k1, k2, k3 = jax.random.split(key, 3)

    N, C, H, W = 2, 4, 16, 16
    inp = jax.random.normal(k1, (N, C, H, W), dtype=jnp.float32)      # unused
    output = jax.random.normal(k2, (N, C, H, W), dtype=jnp.float32)   # logits
    target = (jax.random.uniform(k3, (N, C, H, W)) > 0.5).astype(jnp.float32)

    loss = jax.block_until_ready(dice_loss(inp, output, target))
    ref = jax.block_until_ready(_reference(inp, output, target))
    np.testing.assert_allclose(np.asarray(loss), np.asarray(ref),
                               rtol=1e-4, atol=1e-5)

    print("KERNEL_OK")
</pallas_src>

<mosaic_0001>
module attributes {stable_mosaic.version = 11 : i64} {
  func.func @kernel(%arg0: i32, %arg1: i32, %arg2: memref<8x1024xf32, #tpu.memory_space<vmem>>, %arg3: memref<8x1024xf32, #tpu.memory_space<vmem>>, %arg4: memref<8x128xf32, #tpu.memory_space<vmem>>, %arg5: memref<8x1xf32, #tpu.memory_space<vmem>>, %arg6: memref<8x1xf32, #tpu.memory_space<vmem>>, %arg7: memref<8x1xf32, #tpu.memory_space<vmem>>) attributes {dimension_semantics = [#tpu.dimension_semantics<parallel>, #tpu.dimension_semantics<arbitrary>], iteration_bounds = array<i64: 1, 1>, scalar_prefetch = 0 : i64, scratch_operands = 3 : i64, tpu.core_type = #tpu.core_type<tc>, window_params = [{transform_indices = @transform_0, window_bounds = array<i64: 8, 1024>}, {transform_indices = @transform_1, window_bounds = array<i64: 8, 1024>}, {transform_indices = @transform_2, window_bounds = array<i64: 8, 128>}]} {
    %c0_i32 = arith.constant 0 : i32
    %0 = arith.cmpi eq, %arg1, %c0_i32 : i32
    %1 = arith.extui %0 : i1 to i32
    %c0_i32_0 = arith.constant 0 : i32
    %2 = arith.cmpi ne, %1, %c0_i32_0 : i32
    scf.if %2 {
      %cst_21 = arith.constant 0.000000e+00 : f32
      %29 = vector.broadcast %cst_21 : f32 to vector<8x1xf32>
      %c0_22 = arith.constant 0 : index
      %c0_23 = arith.constant 0 : index
      %30 = vector.load %arg5[%c0_22, %c0_23] : memref<8x1xf32, #tpu.memory_space<vmem>>, vector<8x1xf32>
      tpu.vector_store %arg5[%c0_22, %c0_23], %29 {strides = array<i32>} : memref<8x1xf32, #tpu.memory_space<vmem>>, vector<8x1xf32>,
      %cst_24 = arith.constant 0.000000e+00 : f32
      %31 = vector.broadcast %cst_24 : f32 to vector<8x1xf32>
      %c0_25 = arith.constant 0 : index
      %c0_26 = arith.constant 0 : index
      %32 = vector.load %arg6[%c0_25, %c0_26] : memref<8x1xf32, #tpu.memory_space<vmem>>, vector<8x1xf32>
      tpu.vector_store %arg6[%c0_25, %c0_26], %31 {strides = array<i32>} : memref<8x1xf32, #tpu.memory_space<vmem>>, vector<8x1xf32>,
      %cst_27 = arith.constant 0.000000e+00 : f32
      %33 = vector.broadcast %cst_27 : f32 to vector<8x1xf32>
      %c0_28 = arith.constant 0 : index
      %c0_29 = arith.constant 0 : index
      %34 = vector.load %arg7[%c0_28, %c0_29] : memref<8x1xf32, #tpu.memory_space<vmem>>, vector<8x1xf32>
      tpu.vector_store %arg7[%c0_28, %c0_29], %33 {strides = array<i32>} : memref<8x1xf32, #tpu.memory_space<vmem>>, vector<8x1xf32>,
    } else {
    }
    %c0 = arith.constant 0 : index
    %c0_1 = arith.constant 0 : index
    %3 = vector.load %arg2[%c0, %c0_1] : memref<8x1024xf32, #tpu.memory_space<vmem>>, vector<8x1024xf32>
    %4 = arith.negf %3 : vector<8x1024xf32>
    %5 = math.exp %4 : vector<8x1024xf32>
    %cst = arith.constant 1.000000e+00 : f32
    %6 = vector.broadcast %cst : f32 to vector<8x1024xf32>
    %7 = arith.addf %6, %5 : vector<8x1024xf32>
    %8 = arith.divf %6, %7 : vector<8x1024xf32>
    %c0_2 = arith.constant 0 : index
    %c0_3 = arith.constant 0 : index
    %9 = vector.load %arg3[%c0_2, %c0_3] : memref<8x1024xf32, #tpu.memory_space<vmem>>, vector<8x1024xf32>
    %c0_4 = arith.constant 0 : index
    %c0_5 = arith.constant 0 : index
    %10 = vector.load %arg5[%c0_4, %c0_5] : memref<8x1xf32, #tpu.memory_space<vmem>>, vector<8x1xf32>
    %11 = arith.mulf %8, %9 : vector<8x1024xf32>
    %cst_6 = arith.constant dense<0.000000e+00> : vector<8xf32>
    %12 = vector.multi_reduction <add>, %11, %cst_6 [1] : vector<8x1024xf32> to vector<8xf32>
    %13 = vector.shape_cast %12 : vector<8xf32> to vector<8x1xf32>
    %14 = arith.addf %10, %13 : vector<8x1xf32>
    %c0_7 = arith.constant 0 : index
    %c0_8 = arith.constant 0 : index
    %15 = vector.load %arg5[%c0_7, %c0_8] : memref<8x1xf32, #tpu.memory_space<vmem>>, vector<8x1xf32>
    tpu.vector_store %arg5[%c0_7, %c0_8], %14 {strides = array<i32>} : memref<8x1xf32, #tpu.memory_space<vmem>>, vector<8x1xf32>,
    %c0_9 = arith.constant 0 : index
    %c0_10 = arith.constant 0 : index
    %16 = vector.load %arg6[%c0_9, %c0_10] : memref<8x1xf32, #tpu.memory_space<vmem>>, vector<8x1xf32>
    %cst_11 = arith.constant dense<0.000000e+00> : vector<8xf32>
    %17 = vector.multi_reduction <add>, %8, %cst_11 [1] : vector<8x1024xf32> to vector<8xf32>
    %18 = vector.shape_cast %17 : vector<8xf32> to vector<8x1xf32>
    %19 = arith.addf %16, %18 : vector<8x1xf32>
    %c0_12 = arith.constant 0 : index
    %c0_13 = arith.constant 0 : index
    %20 = vector.load %arg6[%c0_12, %c0_13] : memref<8x1xf32, #tpu.memory_space<vmem>>, vector<8x1xf32>
    tpu.vector_store %arg6[%c0_12, %c0_13], %19 {strides = array<i32>} : memref<8x1xf32, #tpu.memory_space<vmem>>, vector<8x1xf32>,
    %c0_14 = arith.constant 0 : index
    %c0_15 = arith.constant 0 : index
    %21 = vector.load %arg7[%c0_14, %c0_15] : memref<8x1xf32, #tpu.memory_space<vmem>>, vector<8x1xf32>
    %cst_16 = arith.constant dense<0.000000e+00> : vector<8xf32>
    %22 = vector.multi_reduction <add>, %9, %cst_16 [1] : vector<8x1024xf32> to vector<8xf32>
    %23 = vector.shape_cast %22 : vector<8xf32> to vector<8x1xf32>
    %24 = arith.addf %21, %23 : vector<8x1xf32>
    %c0_17 = arith.constant 0 : index
    %c0_18 = arith.constant 0 : index
    %25 = vector.load %arg7[%c0_17, %c0_18] : memref<8x1xf32, #tpu.memory_space<vmem>>, vector<8x1xf32>
    tpu.vector_store %arg7[%c0_17, %c0_18], %24 {strides = array<i32>} : memref<8x1xf32, #tpu.memory_space<vmem>>, vector<8x1xf32>,
    %c0_i32_19 = arith.constant 0 : i32
    %26 = arith.cmpi eq, %arg1, %c0_i32_19 : i32
    %27 = arith.extui %26 : i1 to i32
    %c0_i32_20 = arith.constant 0 : i32
    %28 = arith.cmpi ne, %27, %c0_i32_20 : i32
    scf.if %28 {
      %c0_21 = arith.constant 0 : index
      %c0_22 = arith.constant 0 : index
      %29 = vector.load %arg5[%c0_21, %c0_22] : memref<8x1xf32, #tpu.memory_space<vmem>>, vector<8x1xf32>
      %cst_23 = arith.constant 2.000000e+00 : f32
      %30 = vector.broadcast %cst_23 : f32 to vector<8x1xf32>
      %31 = arith.mulf %30, %29 : vector<8x1xf32>
      %cst_24 = arith.constant 9.99999974E-6 : f32
      %32 = vector.broadcast %cst_24 : f32 to vector<8x1xf32>
      %33 = arith.addf %31, %32 : vector<8x1xf32>
      %c0_25 = arith.constant 0 : index
      %c0_26 = arith.constant 0 : index
      %34 = vector.load %arg6[%c0_25, %c0_26] : memref<8x1xf32, #tpu.memory_space<vmem>>, vector<8x1xf32>
      %c0_27 = arith.constant 0 : index
      %c0_28 = arith.constant 0 : index
      %35 = vector.load %arg7[%c0_27, %c0_28] : memref<8x1xf32, #tpu.memory_space<vmem>>, vector<8x1xf32>
      %36 = arith.addf %34, %35 : vector<8x1xf32>
      %cst_29 = arith.constant 9.99999974E-6 : f32
      %37 = vector.broadcast %cst_29 : f32 to vector<8x1xf32>
      %38 = arith.addf %36, %37 : vector<8x1xf32>
      %39 = arith.divf %33, %38 : vector<8x1xf32>
      %40 = vector.shape_cast %39 : vector<8x1xf32> to vector<8x1xf32>
      %41 = vector.broadcast %40 : vector<8x1xf32> to vector<8x128xf32>
      %c0_30 = arith.constant 0 : index
      %c0_31 = arith.constant 0 : index
      %42 = vector.load %arg4[%c0_30, %c0_31] : memref<8x128xf32, #tpu.memory_space<vmem>>, vector<8x128xf32>
      tpu.vector_store %arg4[%c0_30, %c0_31], %41 {strides = array<i32>} : memref<8x128xf32, #tpu.memory_space<vmem>>, vector<8x128xf32>,
    } else {
    }
    return
  }
  func.func @transform_0(%arg0: i32, %arg1: i32) -> (i32, i32) {
    %c0_i32 = arith.constant 0 : i32
    return %arg0, %arg1 : i32, i32
  }
  func.func @transform_1(%arg0: i32, %arg1: i32) -> (i32, i32) {
    %c0_i32 = arith.constant 0 : i32
    return %arg0, %arg1 : i32, i32
  }
  func.func @transform_2(%arg0: i32, %arg1: i32) -> (i32, i32) {
    %c0_i32 = arith.constant 0 : i32
    %c0_i32_0 = arith.constant 0 : i32
    return %arg0, %c0_i32 : i32, i32
  }
}

</mosaic_0001>

<llo_original>
// kernel: tpu_custom_call.1
$region0: #{tpu_custom_call.1}
  #allocation0 [shape = 'u32[]', space=smem, size = 0x4, offset = 0x4, fixed_abs, tag = 'smem constant byte address 0x4 - core index']
  #allocation1 [shape = 'u32[144,128]{1,0:T(1,128)}', space=vmem, size = 0x12000, scoped, tag = 'internal scratch']
  #allocation2 [shape = 'f32[8,1]{1,0:T(8,128)}', space=vmem, size = 0x1000, scoped, tag = 'scratch operand']
  #allocation3 [shape = 'f32[8,1]{1,0:T(8,128)}', space=vmem, size = 0x1000, scoped, tag = 'scratch operand']
  #allocation4 [shape = 'f32[8,1]{1,0:T(8,128)}', space=vmem, size = 0x1000, scoped, tag = 'scratch operand']
  %s0 = inlined_call_operand.hbm [shape: f32[2,1024], index: 0, kind: input, shape index: {}]
  %s1 = inlined_call_operand.hbm [shape: f32[2,1024], index: 1, kind: input, shape index: {}]
  %s2 = inlined_call_operand.hbm [shape: f32[8,128], index: 2, kind: output, shape index: {}]
  %s3 = sld [smem:[#allocation0]]
  $region34: #{tpu_custom_call.1} parent=0
    _
  %s5 = ssub.s32 1, %s3
  %s6 = scalar_select 0, %s5, %s3
  $region1: #{tpu_custom_call.1} parent=0
    #allocation5 [shape = 'u8[32768]{0}', space=vmem, size = 0x8000, scoped, tag = 'input window, operand 0, single buffered']
    #allocation6 [shape = 's32[1]{0}', space=sflag, size = 0x4, scoped, tag = 'scoped memory for tpu_custom_call.1']
    #allocation7 [shape = 's32[1]{0}', space=sflag, size = 0x4, scoped, tag = 'scoped memory for tpu_custom_call.1']
    #allocation8 [shape = 'u8[32768]{0}', space=vmem, size = 0x8000, scoped, tag = 'input window, operand 1, single buffered']
    #allocation9 [shape = 's32[1]{0}', space=sflag, size = 0x4, scoped, tag = 'scoped memory for tpu_custom_call.1']
    #allocation10 [shape = 'u8[4096]{0}', space=vmem, size = 0x1000, scoped, tag = 'output window, operand 0, single buffered']
    %7 = vsyncpa [#allocation6], 0
    %8 = vsyncpa [#allocation9], 0
    %9 = vsyncpa [#allocation7], 0
    // Predicated region
    $region2: #{tpu_custom_call.1} parent=1 // pred_check
      _
    $region3: #{tpu_custom_call.1} parent=1 // pred_check_branch
      %11 = sbr.rel (0) target = $region5
    $region4: #{tpu_custom_call.1} parent=1 // pred_region
      %s13 = ssub.s32 1024, 256
      %14 = vsyncadd [#allocation6], %s13
      %s15 = sshll.u32 [#allocation5], 4
      %s16 = int_to_ptr.vmem [resolvable:$true] %s15
      %21 = dma.hbm_to_vmem [thread:$0]  %s0, 256, %s16, [#allocation6], 256, 256, 16
    $region5: #{tpu_custom_call.1} parent=1 // pred_fallthru
      _
    // Predicated region
    $region6: #{tpu_custom_call.1} parent=1 // pred_check
      _
    $region7: #{tpu_custom_call.1} parent=1 // pred_check_branch
      %23 = sbr.rel (0) target = $region9
    $region8: #{tpu_custom_call.1} parent=1 // pred_region
      %s25 = ssub.s32 1024, 256
      %26 = vsyncadd [#allocation9], %s25
      %s27 = sshll.u32 [#allocation8], 4
      %s28 = int_to_ptr.vmem [resolvable:$true] %s27
      %33 = dma.hbm_to_vmem [thread:$0]  %s1, 256, %s28, [#allocation9], 256, 256, 16
    $region9: #{tpu_custom_call.1} parent=1 // pred_fallthru
      _
    // Predicated region
    $region10: #{tpu_custom_call.1} parent=1 // pred_check
      _
    $region11: #{tpu_custom_call.1} parent=1 // pred_check_branch
      %35 = sbr.rel (0) target = $region13
    $region12: #{tpu_custom_call.1} parent=1 // pred_region
      %36 = dma.done [#allocation6], 1024
    $region13: #{tpu_custom_call.1} parent=1 // pred_fallthru
      _
    // Predicated region
    $region14: #{tpu_custom_call.1} parent=1 // pred_check
      _
    $region15: #{tpu_custom_call.1} parent=1 // pred_check_branch
      %38 = sbr.rel (0) target = $region17
    $region16: #{tpu_custom_call.1} parent=1 // pred_region
      %39 = dma.done [#allocation9], 1024
    $region17: #{tpu_custom_call.1} parent=1 // pred_fallthru
      _
    %p40 = scmp.eq.s32.totalorder 0, 0
    // Predicated region
    $region18: #{tpu_custom_call.1} parent=1 // pred_check
      %p41 = pneg %p40
    $region19: #{tpu_custom_call.1} parent=1 // pred_check_branch
      %43 = sbr.rel (%p41) target = $region21
    $region20: #{tpu_custom_call.1} parent=1 // pred_region
      %vm44 = vcmask 7168
      %45 = vst.msk [vmem:[#allocation2] sm:$0xff] %vm44, 0.0
      %46 = vst.msk [vmem:[#allocation3] sm:$0xff] %vm44, 0.0
      %47 = vst.msk [vmem:[#allocation4] sm:$0xff] %vm44, 0.0
    $region21: #{tpu_custom_call.1} parent=1 // pred_fallthru
      _
    %v48 = vld [vmem:[#allocation5] sm:$0xff]
    %v49 = vld [vmem:[#allocation5 + $0x8] sm:$0xff]
    %v50 = vld [vmem:[#allocation5 + $0x10] sm:$0xff]
    %v51 = vld [vmem:[#allocation5 + $0x18] sm:$0xff]
    %v52 = vld [vmem:[#allocation5 + $0x20] sm:$0xff]
    %v53 = vld [vmem:[#allocation5 + $0x28] sm:$0xff]
    %v54 = vld [vmem:[#allocation5 + $0x30] sm:$0xff]
    %v55 = vld [vmem:[#allocation5 + $0x38] sm:$0xff]
    %v56 = vxor.u32 %v48, 2147483648
    %v57 = vxor.u32 %v49, 2147483648
    %v58 = vxor.u32 %v50, 2147483648
    %v59 = vxor.u32 %v51, 2147483648
    %v60 = vxor.u32 %v52, 2147483648
    %v61 = vxor.u32 %v53, 2147483648
    %v62 = vxor.u32 %v54, 2147483648
    %v63 = vxor.u32 %v55, 2147483648
    %v64 = vmul.f32 %v56, 1.442695
    %v65 = vpow.pop %v64
    %v66 = vmul.f32 %v57, 1.442695
    %v67 = vpow.pop %v66
    %v68 = vmul.f32 %v58, 1.442695
    %v69 = vpow.pop %v68
    %v70 = vmul.f32 %v59, 1.442695
    %v71 = vpow.pop %v70
    %v72 = vmul.f32 %v60, 1.442695
    %v73 = vpow.pop %v72
    %v74 = vmul.f32 %v61, 1.442695
    %v75 = vpow.pop %v74
    %v76 = vmul.f32 %v62, 1.442695
    %v77 = vpow.pop %v76
    %v78 = vmul.f32 %v63, 1.442695
    %v79 = vpow.pop %v78
    %v80 = vadd.f32 %v65, 1.0
    %v81 = vadd.f32 %v67, 1.0
    %v82 = vadd.f32 %v69, 1.0
    %v83 = vadd.f32 %v71, 1.0
    %v84 = vadd.f32 %v73, 1.0
    %v85 = vadd.f32 %v75, 1.0
    %v86 = vadd.f32 %v77, 1.0
    %v87 = vadd.f32 %v79, 1.0
    %v88 = vrcp.pop %v80
    %v89 = vmul.f32 1.0, %v88
    %v90 = vrcp.pop %v81
    %v91 = vmul.f32 1.0, %v90
    %v92 = vrcp.pop %v82
    %v93 = vmul.f32 1.0, %v92
    %v94 = vrcp.pop %v83
    %v95 = vmul.f32 1.0, %v94
    %v96 = vrcp.pop %v84
    %v97 = vmul.f32 1.0, %v96
    %v98 = vrcp.pop %v85
    %v99 = vmul.f32 1.0, %v98
    %v100 = vrcp.pop %v86
    %v101 = vmul.f32 1.0, %v100
    %v102 = vrcp.pop %v87
    %v103 = vmul.f32 1.0, %v102
    %v104 = vld [vmem:[#allocation8] sm:$0xff]
    %v105 = vld [vmem:[#allocation8 + $0x8] sm:$0xff]
    %v106 = vld [vmem:[#allocation8 + $0x10] sm:$0xff]
    %v107 = vld [vmem:[#allocation8 + $0x18] sm:$0xff]
    %v108 = vld [vmem:[#allocation8 + $0x20] sm:$0xff]
    %v109 = vld [vmem:[#allocation8 + $0x28] sm:$0xff]
    %v110 = vld [vmem:[#allocation8 + $0x30] sm:$0xff]
    %v111 = vld [vmem:[#allocation8 + $0x38] sm:$0xff]
    %v112 = vld [vmem:[#allocation2] sm:$0xff]
    %v113 = vmul.f32 %v89, %v104
    %v114 = vmul.f32 %v91, %v105
    %v115 = vmul.f32 %v93, %v106
    %v116 = vmul.f32 %v95, %v107
    %v117 = vmul.f32 %v97, %v108
    %v118 = vmul.f32 %v99, %v109
    %v119 = vmul.f32 %v101, %v110
    %v120 = vmul.f32 %v103, %v111
    %v129 = vcombine.low %v113, %v115
    %v130 = vcombine.high %v113, %v115
    %v131 = vcombine.low %v117, %v119
    %v132 = vcombine.high %v117, %v119
    %v134 = vunpack.c.l.s4 1983009808
    %v135 = vunpack.c.0.s8 %v134
    %v136 = vlaneseq
    %v137 = vshrl.u32 %v136, 7
    %v138 = vsub.s32 %v135, %v137
    %v139 = vrot.slane %v129, %v138
    %v141 = vunpack.c.l.s4 1983009808
    %v142 = vunpack.c.0.s8 %v141
    %v143 = vlaneseq
    %v144 = vshrl.u32 %v143, 7
    %v145 = vsub.s32 %v142, %v144
    %v146 = vrot.slane %v130, %v145
    %v148 = vunpack.c.l.s4 1983009808
    %v149 = vunpack.c.0.s8 %v148
    %v150 = vlaneseq
    %v151 = vshrl.u32 %v150, 7
    %v152 = vsub.s32 %v149, %v151
    %v153 = vrot.slane %v131, %v152
    %v155 = vunpack.c.l.s4 1983009808
    %v156 = vunpack.c.0.s8 %v155
    %v157 = vlaneseq
    %v158 = vshrl.u32 %v157, 7
    %v159 = vsub.s32 %v156, %v158
    %v160 = vrot.slane %v132, %v159
    %v161 = vcombine.low %v139, %v153
    %v162 = vcombine.high %v139, %v153
    %v163 = vcombine.low %v146, %v160
    %v164 = vcombine.high %v146, %v160
    %v165 = vcombine.low %v114, %v116
    %v166 = vcombine.high %v114, %v116
    %v167 = vcombine.low %v118, %v120
    %v168 = vcombine.high %v118, %v120
    %v170 = vunpack.c.l.s4 1983009808
    %v171 = vunpack.c.0.s8 %v170
    %v172 = vlaneseq
    %v173 = vshrl.u32 %v172, 7
    %v174 = vsub.s32 %v171, %v173
    %v175 = vrot.slane %v165, %v174
    %v177 = vunpack.c.l.s4 1983009808
    %v178 = vunpack.c.0.s8 %v177
    %v179 = vlaneseq
    %v180 = vshrl.u32 %v179, 7
    %v181 = vsub.s32 %v178, %v180
    %v182 = vrot.slane %v166, %v181
    %v184 = vunpack.c.l.s4 1983009808
    %v185 = vunpack.c.0.s8 %v184
    %v186 = vlaneseq
    %v187 = vshrl.u32 %v186, 7
    %v188 = vsub.s32 %v185, %v187
    %v189 = vrot.slane %v167, %v188
    %v191 = vunpack.c.l.s4 1983009808
    %v192 = vunpack.c.0.s8 %v191
    %v193 = vlaneseq
    %v194 = vshrl.u32 %v193, 7
    %v195 = vsub.s32 %v192, %v194
    %v196 = vrot.slane %v168, %v195
    %v197 = vcombine.low %v175, %v189
    %v198 = vcombine.high %v175, %v189
    %v199 = vcombine.low %v182, %v196
    %v200 = vcombine.high %v182, %v196
    %v209 = vadd.f32 %v161, %v162
    %v210 = vadd.f32 %v209, %v163
    %v211 = vadd.f32 %v210, %v164
    %v212 = vadd.f32 %v211, %v197
    %v213 = vadd.f32 %v212, %v198
    %v214 = vadd.f32 %v213, %v199
    %v215 = vadd.f32 %v214, %v200
    %216 = vadd.xlane.f32.xlu0 %v215
    %v217 = vpop.xlane.xlu0 %216
    %v218 = vadd.f32 %v112, %v217
    %vm219 = vcmask 7168
    %220 = vst.msk [vmem:[#allocation2] sm:$0xff] %vm219, %v218
    %v221 = vld [vmem:[#allocation3] sm:$0xff]
    %v230 = vcombine.low %v89, %v93
    %v231 = vcombine.high %v89, %v93
    %v232 = vcombine.low %v97, %v101
    %v233 = vcombine.high %v97, %v101
    %v235 = vunpack.c.l.s4 1983009808
    %v236 = vunpack.c.0.s8 %v235
    %v237 = vlaneseq
    %v238 = vshrl.u32 %v237, 7
    %v239 = vsub.s32 %v236, %v238
    %v240 = vrot.slane %v230, %v239
    %v242 = vunpack.c.l.s4 1983009808
    %v243 = vunpack.c.0.s8 %v242
    %v244 = vlaneseq
    %v245 = vshrl.u32 %v244, 7
    %v246 = vsub.s32 %v243, %v245
    %v247 = vrot.slane %v231, %v246
    %v249 = vunpack.c.l.s4 1983009808
    %v250 = vunpack.c.0.s8 %v249
    %v251 = vlaneseq
    %v252 = vshrl.u32 %v251, 7
    %v253 = vsub.s32 %v250, %v252
    %v254 = vrot.slane %v232, %v253
    %v256 = vunpack.c.l.s4 1983009808
    %v257 = vunpack.c.0.s8 %v256
    %v258 = vlaneseq
    %v259 = vshrl.u32 %v258, 7
    %v260 = vsub.s32 %v257, %v259
    %v261 = vrot.slane %v233, %v260
    %v262 = vcombine.low %v240, %v254
    %v263 = vcombine.high %v240, %v254
    %v264 = vcombine.low %v247, %v261
    %v265 = vcombine.high %v247, %v261
    %v266 = vcombine.low %v91, %v95
    %v267 = vcombine.high %v91, %v95
    %v268 = vcombine.low %v99, %v103
    %v269 = vcombine.high %v99, %v103
    %v271 = vunpack.c.l.s4 1983009808
    %v272 = vunpack.c.0.s8 %v271
    %v273 = vlaneseq
    %v274 = vshrl.u32 %v273, 7
    %v275 = vsub.s32 %v272, %v274
    %v276 = vrot.slane %v266, %v275
    %v278 = vunpack.c.l.s4 1983009808
    %v279 = vunpack.c.0.s8 %v278
    %v280 = vlaneseq
    %v281 = vshrl.u32 %v280, 7
    %v282 = vsub.s32 %v279, %v281
    %v283 = vrot.slane %v267, %v282
    %v285 = vunpack.c.l.s4 1983009808
    %v286 = vunpack.c.0.s8 %v285
    %v287 = vlaneseq
    %v288 = vshrl.u32 %v287, 7
    %v289 = vsub.s32 %v286, %v288
    %v290 = vrot.slane %v268, %v289
    %v292 = vunpack.c.l.s4 1983009808
    %v293 = vunpack.c.0.s8 %v292
    %v294 = vlaneseq
    %v295 = vshrl.u32 %v294, 7
    %v296 = vsub.s32 %v293, %v295
    %v297 = vrot.slane %v269, %v296
    %v298 = vcombine.low %v276, %v290
    %v299 = vcombine.high %v276, %v290
    %v300 = vcombine.low %v283, %v297
    %v301 = vcombine.high %v283, %v297
    %v310 = vadd.f32 %v262, %v263
    %v311 = vadd.f32 %v310, %v264
    %v312 = vadd.f32 %v311, %v265
    %v313 = vadd.f32 %v312, %v298
    %v314 = vadd.f32 %v313, %v299
    %v315 = vadd.f32 %v314, %v300
    %v316 = vadd.f32 %v315, %v301
    %317 = vadd.xlane.f32.xlu0 %v316
    %v318 = vpop.xlane.xlu0 %317
    %v319 = vadd.f32 %v221, %v318
    %320 = vst.msk [vmem:[#allocation3] sm:$0xff] %vm219, %v319
    %v321 = vld [vmem:[#allocation4] sm:$0xff]
    %v330 = vcombine.low %v104, %v106
    %v331 = vcombine.high %v104, %v106
    %v332 = vcombine.low %v108, %v110
    %v333 = vcombine.high %v108, %v110
    %v335 = vunpack.c.l.s4 1983009808
    %v336 = vunpack.c.0.s8 %v335
    %v337 = vlaneseq
    %v338 = vshrl.u32 %v337, 7
    %v339 = vsub.s32 %v336, %v338
    %v340 = vrot.slane %v330, %v339
    %v342 = vunpack.c.l.s4 1983009808
    %v343 = vunpack.c.0.s8 %v342
    %v344 = vlaneseq
    %v345 = vshrl.u32 %v344, 7
    %v346 = vsub.s32 %v343, %v345
    %v347 = vrot.slane %v331, %v346
    %v349 = vunpack.c.l.s4 1983009808
    %v350 = vunpack.c.0.s8 %v349
    %v351 = vlaneseq
    %v352 = vshrl.u32 %v351, 7
    %v353 = vsub.s32 %v350, %v352
    %v354 = vrot.slane %v332, %v353
    %v356 = vunpack.c.l.s4 1983009808
    %v357 = vunpack.c.0.s8 %v356
    %v358 = vlaneseq
    %v359 = vshrl.u32 %v358, 7
    %v360 = vsub.s32 %v357, %v359
    %v361 = vrot.slane %v333, %v360
    %v362 = vcombine.low %v340, %v354
    %v363 = vcombine.high %v340, %v354
    %v364 = vcombine.low %v347, %v361
    %v365 = vcombine.high %v347, %v361
    %v366 = vcombine.low %v105, %v107
    %v367 = vcombine.high %v105, %v107
    %v368 = vcombine.low %v109, %v111
    %v369 = vcombine.high %v109, %v111
    %v371 = vunpack.c.l.s4 1983009808
    %v372 = vunpack.c.0.s8 %v371
    %v373 = vlaneseq
    %v374 = vshrl.u32 %v373, 7
    %v375 = vsub.s32 %v372, %v374
    %v376 = vrot.slane %v366, %v375
    %v378 = vunpack.c.l.s4 1983009808
    %v379 = vunpack.c.0.s8 %v378
    %v380 = vlaneseq
    %v381 = vshrl.u32 %v380, 7
    %v382 = vsub.s32 %v379, %v381
    %v383 = vrot.slane %v367, %v382
    %v385 = vunpack.c.l.s4 1983009808
    %v386 = vunpack.c.0.s8 %v385
    %v387 = vlaneseq
    %v388 = vshrl.u32 %v387, 7
    %v389 = vsub.s32 %v386, %v388
    %v390 = vrot.slane %v368, %v389
    %v392 = vunpack.c.l.s4 1983009808
    %v393 = vunpack.c.0.s8 %v392
    %v394 = vlaneseq
    %v395 = vshrl.u32 %v394, 7
    %v396 = vsub.s32 %v393, %v395
    %v397 = vrot.slane %v369, %v396
    %v398 = vcombine.low %v376, %v390
    %v399 = vcombine.high %v376, %v390
    %v400 = vcombine.low %v383, %v397
    %v401 = vcombine.high %v383, %v397
    %v410 = vadd.f32 %v362, %v363
    %v411 = vadd.f32 %v410, %v364
    %v412 = vadd.f32 %v411, %v365
    %v413 = vadd.f32 %v412, %v398
    %v414 = vadd.f32 %v413, %v399
    %v415 = vadd.f32 %v414, %v400
    %v416 = vadd.f32 %v415, %v401
    %417 = vadd.xlane.f32.xlu0 %v416
    %v418 = vpop.xlane.xlu0 %417
    %v419 = vadd.f32 %v321, %v418
    %420 = vst.msk [vmem:[#allocation4] sm:$0xff] %vm219, %v419
    // Predicated region
    $region22: #{tpu_custom_call.1} parent=1 // pred_check
      %p421 = pneg %p40
    $region23: #{tpu_custom_call.1} parent=1 // pred_check_branch
      %423 = sbr.rel (%p421) target = $region25
    $region24: #{tpu_custom_call.1} parent=1 // pred_region
      %v424 = vld [vmem:[#allocation2] sm:$0xff]
      %v425 = vmul.f32 %v424, 2.0
      %v426 = vadd.f32 %v425, 1e-05
      %v427 = vld [vmem:[#allocation3] sm:$0xff]
      %v428 = vld [vmem:[#allocation4] sm:$0xff]
      %v429 = vadd.f32 %v427, %v428
      %v430 = vadd.f32 %v429, 1e-05
      %v431 = vrcp.pop %v430
      %v432 = vmul.f32 %v426, %v431
      %434 = vset.pattern.permute.xlu0 0
      %435 = vperm.xlu0 %434, %v432
      %v436 = vpop.permute.xlu0 %435
      %438 = vst [vmem:[#allocation10] sm:$0xff] %v436
    $region25: #{tpu_custom_call.1} parent=1 // pred_fallthru
      _
    // Predicated region
    $region26: #{tpu_custom_call.1} parent=1 // pred_check
      _
    $region27: #{tpu_custom_call.1} parent=1 // pred_check_branch
      %440 = sbr.rel (0) target = $region29
    $region28: #{tpu_custom_call.1} parent=1 // pred_region
      %s442 = ssub.s32 128, 128
      %443 = vsyncadd [#allocation7], %s442
      %s445 = sshll.u32 [#allocation10], 4
      %s446 = int_to_ptr.vmem [resolvable:$true] %s445
      %448 = dma.vmem_to_hbm [thread:$0]  %s446, 128, %s2, [#allocation7]
    $region29: #{tpu_custom_call.1} parent=1 // pred_fallthru
      _
    // Predicated region
    $region30: #{tpu_custom_call.1} parent=1 // pred_check
      _
    $region31: #{tpu_custom_call.1} parent=1 // pred_check_branch
      %450 = sbr.rel (0) target = $region33
    $region32: #{tpu_custom_call.1} parent=1 // pred_region
      %451 = dma.done [#allocation7], 128
    $region33: #{tpu_custom_call.1} parent=1 // pred_fallthru
      _
    %452 = vsyncpa [#allocation6], 1
    %453 = vsyncpa [#allocation9], 1
    %454 = vsyncpa [#allocation7], 1

</llo_original>
